<compile_context>
chip_gen: v6e
topology: v6e:2x2x1
jax: 0.10.0
libtpu: 0.0.40
codegen_flags: <defaults>
</compile_context>

<pallas_src>
import functools

import jax
import jax.numpy as jnp
from jax.experimental import pallas as pl
from jax.experimental.pallas import tpu as pltpu

EPS = 1e-5


def _round_up(x, m):
    return (x + m - 1) // m * m


def _cdiv(a, b):
    return (a + b - 1) // b


def _vmem_cap_bytes():
    try:
        return int(pltpu.get_tpu_info().vmem_capacity_bytes)
    except Exception:
        return 64 << 20  # conservative (v7x per-TC) fallback


def _vmem_limit(byte_terms, headroom=2 << 20):
    # Tile-derived scoped-VMEM budget; never claim more than half of physical per-core VMEM
    # (=> ~32 MiB on v7x, ~64 MiB on v5e/v6e) so Mosaic internal scratch still fits.
    cap = max(_vmem_cap_bytes() // 2, 16 << 20)
    need = sum(byte_terms) + headroom
    return int(min(max(need, 16 << 20), cap))


# -----------------------------------------------------------------------------
# Pass 1: conv-as-matmul on the MXU + per-super-chunk per-channel sum / sum-of-squares.
#   p_ref  : (K_pad, TR)    bf16 im2col patches tile (columns = output positions, lane-dense)
#   w_ref  : (C_out, K_pad) bf16 flattened conv weight (constant block -> resident)
#   y_ref  : (C_out, TR)    bf16 pre-BN conv output tile (lane-dense store)
#   sum_ref/ss_ref : (1, C_out, 1) f32 partial accumulators, resident across the inner axis,
#                    one slot per "parallel" super-chunk p.
def _conv_stats_kernel(p_ref, w_ref, y_ref, sum_ref, ss_ref):
    @pl.when(pl.program_id(1) == 0)
    def _init():
        sum_ref[...] = jnp.zeros_like(sum_ref)
        ss_ref[...] = jnp.zeros_like(ss_ref)

    y = jnp.dot(w_ref[...], p_ref[...], preferred_element_type=jnp.float32)
    y_ref[...] = y.astype(y_ref.dtype)
    # Stats from the f32 MXU result (before the bf16 cast of the stored intermediate).
    sum_ref[...] += jnp.sum(y, axis=-1, keepdims=True)[None]
    ss_ref[...] += jnp.sum(y * y, axis=-1, keepdims=True)[None]


# -----------------------------------------------------------------------------
# Pass 2: fused BatchNorm affine (precomputed per-channel scale/shift) + ReLU,
# written directly into the (N, C_out, OH*OW_pad) output slab (no epilogue transpose).
def _bn_relu_kernel(y_ref, scale_ref, shift_ref, o_ref):
    y = y_ref[...].astype(jnp.float32)
    o = y * scale_ref[...] + shift_ref[...]
    o_ref[...] = jnp.maximum(o, 0.0)[None]


@functools.partial(jax.jit, static_argnames=("stride", "padding", "tile_r"))
def custom_cnn_layer(x_nchw, weight, bias, gamma, beta, *, stride=1, padding=1, tile_r=8192):
    """x_nchw: (N, C_in, H, W); weight: (C_out, C_in, KH, KW); bias/gamma/beta: (C_out,)."""
    del bias  # Exactly cancelled by train-mode BatchNorm mean subtraction.

    N, C_in, H, W = x_nchw.shape
    C_out, _, KH, KW = weight.shape
    OH = (H + 2 * padding - KH) // stride + 1
    OW = (W + 2 * padding - KW) // stride + 1
    OHW = OH * OW
    OHW_pad = _round_up(OHW, 128)      # per-image, lane-aligned column block
    R_true = N * OHW                   # true number of conv outputs per channel
    C_cols = N * OHW_pad               # columns in the (K, cols) matmul layout
    K = C_in * KH * KW
    K_pad = _round_up(K, 16)           # bf16 sublane granularity only (NOT 128)

    assert tile_r % 128 == 0, "tile_r must be a multiple of the 128-lane width"
    tr = max(128, min(tile_r, _round_up(C_cols, 256)))
    num_tiles = _cdiv(C_cols, tr)
    P = 2 if num_tiles >= 2 else 1     # "parallel" super-chunks (v7x: one per TensorCore)
    T = _cdiv(num_tiles, P)            # inner "arbitrary" tiles per super-chunk
    R_pad = P * T * tr

    # im2col directly in (K, cols) layout; K ordering = (c_in, kh, kw) matches the natural
    # (C_out, C_in*KH*KW) weight flatten. Columns are grouped per image and padded to a
    # 128-multiple per image so pass 2 can index whole images without a transpose.
    xp = jnp.pad(x_nchw, ((0, 0), (0, 0), (padding, padding), (padding, padding)))
    cols = []
    for kh in range(KH):
        for kw in range(KW):
            sl = xp[:, :, kh:kh + stride * OH:stride, kw:kw + stride * OW:stride]
            cols.append(jnp.transpose(sl, (1, 0, 2, 3)).reshape(C_in, N, OHW))
    patches = jnp.stack(cols, axis=1).reshape(K, N, OHW)
    patches = jnp.pad(patches, ((0, K_pad - K), (0, 0), (0, OHW_pad - OHW)))
    patches = patches.reshape(K_pad, C_cols)
    patches = jnp.pad(patches, ((0, 0), (0, R_pad - C_cols))).astype(jnp.bfloat16)

    w_mat = weight.reshape(C_out, K).astype(jnp.float32)
    w_mat = jnp.pad(w_mat, ((0, 0), (0, K_pad - K))).astype(jnp.bfloat16)

    c_sub = _round_up(C_out, 16)
    vmem1 = _vmem_limit([
        2 * K_pad * tr * 2,        # patches tile, bf16, double-buffered
        2 * c_sub * K_pad * 2,     # weight (constant block)
        2 * c_sub * tr * 2,        # y tile, bf16, double-buffered
        4 * P * 8 * 128 * 4,       # stat accumulators ((8,128)-padded)
    ])

    y_flat, csum, css = pl.pallas_call(
        _conv_stats_kernel,
        out_shape=(
            jax.ShapeDtypeStruct((C_out, R_pad), jnp.bfloat16),
            jax.ShapeDtypeStruct((P, C_out, 1), jnp.float32),
            jax.ShapeDtypeStruct((P, C_out, 1), jnp.float32),
        ),
        grid=(P, T),
        in_specs=[
            pl.BlockSpec((K_pad, tr), lambda p, t: (0, p * T + t)),
            pl.BlockSpec((C_out, K_pad), lambda p, t: (0, 0)),
        ],
        out_specs=(
            pl.BlockSpec((C_out, tr), lambda p, t: (0, p * T + t)),
            pl.BlockSpec((1, C_out, 1), lambda p, t: (p, 0, 0)),
            pl.BlockSpec((1, C_out, 1), lambda p, t: (p, 0, 0)),
        ),
        compiler_params=pltpu.CompilerParams(
            dimension_semantics=("parallel", "arbitrary"),  # partial stats per super-chunk
            vmem_limit_bytes=vmem1,
        ),
    )(patches, w_mat)

    # Combine per-chunk partials. Padded columns are exactly zero (bias dropped), so they
    # contribute nothing; divide by the true element count R_true.
    # NOTE: E[y^2]-mean^2 in f32 can cancel for |mean| >> std; guarded with max(.,0).
    r_f = jnp.float32(R_true)
    mean = jnp.sum(csum, axis=0) / r_f                            # (C_out, 1)
    var = jnp.maximum(jnp.sum(css, axis=0) / r_f - mean * mean, 0.0)
    inv_std = jax.lax.rsqrt(var + EPS)
    scale = gamma.reshape(C_out, 1).astype(jnp.float32) * inv_std
    shift = beta.reshape(C_out, 1).astype(jnp.float32) - mean * scale

    # Pass-2 spatial tile: largest multiple of 128 dividing OHW_pad, capped at 8192.
    t2 = 128
    for cand in range(min(OHW_pad, 8192), 0, -128):
        if OHW_pad % cand == 0:
            t2 = cand
            break
    blocks_per_img = OHW_pad // t2

    vmem2 = _vmem_limit([
        2 * c_sub * t2 * 2,    # y tile in (bf16), double-buffered
        2 * c_sub * t2 * 4,    # out tile (f32), double-buffered
        4 * 8 * 128 * 4,       # scale/shift
    ])

    out3 = pl.pallas_call(
        _bn_relu_kernel,
        out_shape=jax.ShapeDtypeStruct((N, C_out, OHW_pad), jnp.float32),
        grid=(N, blocks_per_img),
        in_specs=[
            pl.BlockSpec((C_out, t2), lambda n, s: (0, n * blocks_per_img + s)),
            pl.BlockSpec((C_out, 1), lambda n, s: (0, 0)),
            pl.BlockSpec((C_out, 1), lambda n, s: (0, 0)),
        ],
        out_specs=pl.BlockSpec((1, C_out, t2), lambda n, s: (n, 0, s)),
        compiler_params=pltpu.CompilerParams(
            dimension_semantics=("parallel", "parallel"),  # independent tiles -> megacore
            vmem_limit_bytes=vmem2,
        ),
    )(y_flat, scale, shift)

    # Per-image pad columns are sliced off; the reshape below is layout-preserving (no transpose).
    out = out3[:, :, :OHW].reshape(N, C_out, OH, OW)
    return out


def _reference(x, weight, bias, gamma, beta, *, stride, padding):
    """Pure-XLA f32 reference of Conv2d -> train-mode BatchNorm2d -> ReLU."""
    y = jax.lax.conv_general_dilated(
        x, weight, window_strides=(stride, stride),
        padding=((padding, padding), (padding, padding)),
        dimension_numbers=("NCHW", "OIHW", "NCHW"))
    y = y + bias.reshape(1, -1, 1, 1)
    mean = jnp.mean(y, axis=(0, 2, 3), keepdims=True)
    var = jnp.mean((y - mean) ** 2, axis=(0, 2, 3), keepdims=True)
    yhat = (y - mean) * jax.lax.rsqrt(var + EPS)
    return jnp.maximum(yhat * gamma.reshape(1, -1, 1, 1) + beta.reshape(1, -1, 1, 1), 0.0)


if __name__ == "__main__":
    key = jax.random.PRNGKey(0)
    k_x, k_w, k_b = jax.random.split(key, 3)

    N, C_in, H, W = 2, 4, 16, 16
    C_out, KH, KW = 8, 3, 3

    x = jax.random.normal(k_x, (N, C_in, H, W), dtype=jnp.float32)
    fan_in = C_in * KH * KW
    weight = jax.random.normal(k_w, (C_out, C_in, KH, KW), dtype=jnp.float32) * (1.0 / fan_in) ** 0.5
    bias = jax.random.normal(k_b, (C_out,), dtype=jnp.float32) * 0.1
    gamma = jnp.ones((C_out,), dtype=jnp.float32)
    beta = jnp.zeros((C_out,), dtype=jnp.float32)

    # tile_r=128 -> pass-1 grid (2, 2): exercises both the per-chunk partial-stat slots
    # ("parallel" axis) and the cross-tile resident accumulation ("arbitrary" axis).
    out = custom_cnn_layer(x, weight, bias, gamma, beta, stride=1, padding=1, tile_r=128)
    jax.block_until_ready(out)
    assert out.shape == (N, C_out, H, W)

    ref = _reference(x, weight, bias, gamma, beta, stride=1, padding=1)
    err = float(jnp.max(jnp.abs(out - ref)))
    assert err < 0.1, f"max abs error vs reference too large: {err}"

    print("KERNEL_OK")
</pallas_src>

<mosaic_0001>
module attributes {stable_mosaic.version = 11 : i64} {
  func.func @_bn_relu_kernel(%arg0: i32, %arg1: i32, %arg2: memref<8x256xbf16, #tpu.memory_space<vmem>>, %arg3: memref<8x1xf32, #tpu.memory_space<vmem>>, %arg4: memref<8x1xf32, #tpu.memory_space<vmem>>, %arg5: memref<1x8x256xf32, #tpu.memory_space<vmem>>) attributes {dimension_semantics = [#tpu.dimension_semantics<parallel>, #tpu.dimension_semantics<parallel>], iteration_bounds = array<i64: 2, 1>, scalar_prefetch = 0 : i64, scratch_operands = 0 : i64, tpu.core_type = #tpu.core_type<tc>, window_params = [{transform_indices = @transform_0, window_bounds = array<i64: 8, 256>}, {pipeline_mode = #tpu.pipeline_mode<synchronous>, transform_indices = @transform_1, window_bounds = array<i64: 8, 1>}, {pipeline_mode = #tpu.pipeline_mode<synchronous>, transform_indices = @transform_2, window_bounds = array<i64: 8, 1>}, {transform_indices = @transform_3, window_bounds = array<i64: 1, 8, 256>}]} {
    %c0 = arith.constant 0 : index
    %c0_0 = arith.constant 0 : index
    %0 = vector.load %arg2[%c0, %c0_0] : memref<8x256xbf16, #tpu.memory_space<vmem>>, vector<8x256xbf16>
    %1 = arith.extf %0 : vector<8x256xbf16> to vector<8x256xf32>
    %c0_1 = arith.constant 0 : index
    %c0_2 = arith.constant 0 : index
    %2 = vector.load %arg3[%c0_1, %c0_2] : memref<8x1xf32, #tpu.memory_space<vmem>>, vector<8x1xf32>
    %3 = vector.broadcast %2 : vector<8x1xf32> to vector<8x256xf32>
    %4 = arith.mulf %1, %3 : vector<8x256xf32>
    %c0_3 = arith.constant 0 : index
    %c0_4 = arith.constant 0 : index
    %5 = vector.load %arg4[%c0_3, %c0_4] : memref<8x1xf32, #tpu.memory_space<vmem>>, vector<8x1xf32>
    %6 = vector.broadcast %5 : vector<8x1xf32> to vector<8x256xf32>
    %7 = arith.addf %4, %6 : vector<8x256xf32>
    %cst = arith.constant 0.000000e+00 : f32
    %8 = vector.broadcast %cst : f32 to vector<8x256xf32>
    %9 = arith.maximumf %7, %8 : vector<8x256xf32>
    %10 = vector.shape_cast %9 : vector<8x256xf32> to vector<1x8x256xf32>
    %c0_5 = arith.constant 0 : index
    %c0_6 = arith.constant 0 : index
    %c0_7 = arith.constant 0 : index
    %11 = vector.load %arg5[%c0_5, %c0_6, %c0_7] : memref<1x8x256xf32, #tpu.memory_space<vmem>>, vector<1x8x256xf32>
    tpu.vector_store %arg5[%c0_5, %c0_6, %c0_7], %10 {strides = array<i32>} : memref<1x8x256xf32, #tpu.memory_space<vmem>>, vector<1x8x256xf32>,
    return
  }
  func.func @transform_0(%arg0: i32, %arg1: i32) -> (i32, i32) {
    %c1_i32 = arith.constant 1 : i32
    %0 = arith.muli %arg0, %c1_i32 : i32
    %1 = arith.addi %0, %arg1 : i32
    %c0_i32 = arith.constant 0 : i32
    %c0_i32_0 = arith.constant 0 : i32
    return %c0_i32, %1 : i32, i32
  }
  func.func @transform_1(%arg0: i32, %arg1: i32) -> (i32, i32) {
    %c0_i32 = arith.constant 0 : i32
    %c0_i32_0 = arith.constant 0 : i32
    %c0_i32_1 = arith.constant 0 : i32
    return %c0_i32, %c0_i32_0 : i32, i32
  }
  func.func @transform_2(%arg0: i32, %arg1: i32) -> (i32, i32) {
    %c0_i32 = arith.constant 0 : i32
    %c0_i32_0 = arith.constant 0 : i32
    %c0_i32_1 = arith.constant 0 : i32
    return %c0_i32, %c0_i32_0 : i32, i32
  }
  func.func @transform_3(%arg0: i32, %arg1: i32) -> (i32, i32, i32) {
    %c0_i32 = arith.constant 0 : i32
    %c0_i32_0 = arith.constant 0 : i32
    return %arg0, %c0_i32, %arg1 : i32, i32, i32
  }
}

module attributes {stable_mosaic.version = 11 : i64} {
  func.func @_conv_stats_kernel(%arg0: i32, %arg1: i32, %arg2: memref<48x128xbf16, #tpu.memory_space<vmem>>, %arg3: memref<8x48xbf16, #tpu.memory_space<vmem>>, %arg4: memref<8x128xbf16, #tpu.memory_space<vmem>>, %arg5: memref<1x8x1xf32, #tpu.memory_space<vmem>>, %arg6: memref<1x8x1xf32, #tpu.memory_space<vmem>>) attributes {dimension_semantics = [#tpu.dimension_semantics<parallel>, #tpu.dimension_semantics<arbitrary>], iteration_bounds = array<i64: 2, 2>, scalar_prefetch = 0 : i64, scratch_operands = 0 : i64, tpu.core_type = #tpu.core_type<tc>, window_params = [{transform_indices = @transform_0, window_bounds = array<i64: 48, 128>}, {pipeline_mode = #tpu.pipeline_mode<synchronous>, transform_indices = @transform_1, window_bounds = array<i64: 8, 48>}, {transform_indices = @transform_2, window_bounds = array<i64: 8, 128>}, {transform_indices = @transform_3, window_bounds = array<i64: 1, 8, 1>}, {transform_indices = @transform_4, window_bounds = array<i64: 1, 8, 1>}]} {
    %c0_i32 = arith.constant 0 : i32
    %0 = arith.cmpi eq, %arg1, %c0_i32 : i32
    %1 = arith.extui %0 : i1 to i32
    %c0_i32_0 = arith.constant 0 : i32
    %2 = arith.cmpi ne, %1, %c0_i32_0 : i32
    scf.if %2 {
      %cst_20 = arith.constant 0.000000e+00 : f32
      %21 = vector.broadcast %cst_20 : f32 to vector<1x8x1xf32>
      %c0_21 = arith.constant 0 : index
      %c0_22 = arith.constant 0 : index
      %c0_23 = arith.constant 0 : index
      %22 = vector.load %arg5[%c0_21, %c0_22, %c0_23] : memref<1x8x1xf32, #tpu.memory_space<vmem>>, vector<1x8x1xf32>
      tpu.vector_store %arg5[%c0_21, %c0_22, %c0_23], %21 {strides = array<i32>} : memref<1x8x1xf32, #tpu.memory_space<vmem>>, vector<1x8x1xf32>,
      %cst_24 = arith.constant 0.000000e+00 : f32
      %23 = vector.broadcast %cst_24 : f32 to vector<1x8x1xf32>
      %c0_25 = arith.constant 0 : index
      %c0_26 = arith.constant 0 : index
      %c0_27 = arith.constant 0 : index
      %24 = vector.load %arg6[%c0_25, %c0_26, %c0_27] : memref<1x8x1xf32, #tpu.memory_space<vmem>>, vector<1x8x1xf32>
      tpu.vector_store %arg6[%c0_25, %c0_26, %c0_27], %23 {strides = array<i32>} : memref<1x8x1xf32, #tpu.memory_space<vmem>>, vector<1x8x1xf32>,
    } else {
    }
    %c0 = arith.constant 0 : index
    %c0_1 = arith.constant 0 : index
    %3 = vector.load %arg3[%c0, %c0_1] : memref<8x48xbf16, #tpu.memory_space<vmem>>, vector<8x48xbf16>
    %c0_2 = arith.constant 0 : index
    %c0_3 = arith.constant 0 : index
    %4 = vector.load %arg2[%c0_2, %c0_3] : memref<48x128xbf16, #tpu.memory_space<vmem>>, vector<48x128xbf16>
    %cst = arith.constant dense<0.000000e+00> : vector<8x128xf32>
    %5 = tpu.matmul %3, %4, %cst {dimension_numbers = #tpu.dot_dimension_numbers<[1], [0], [0], [1], [0, 0, 1, 1], [], []>} : vector<8x48xbf16>, vector<48x128xbf16>, vector<8x128xf32> -> vector<8x128xf32>
    %6 = arith.truncf %5 : vector<8x128xf32> to vector<8x128xbf16>
    %c0_4 = arith.constant 0 : index
    %c0_5 = arith.constant 0 : index
    %7 = vector.load %arg4[%c0_4, %c0_5] : memref<8x128xbf16, #tpu.memory_space<vmem>>, vector<8x128xbf16>
    tpu.vector_store %arg4[%c0_4, %c0_5], %6 {strides = array<i32>} : memref<8x128xbf16, #tpu.memory_space<vmem>>, vector<8x128xbf16>,
    %c0_6 = arith.constant 0 : index
    %c0_7 = arith.constant 0 : index
    %c0_8 = arith.constant 0 : index
    %8 = vector.load %arg5[%c0_6, %c0_7, %c0_8] : memref<1x8x1xf32, #tpu.memory_space<vmem>>, vector<1x8x1xf32>
    %cst_9 = arith.constant dense<0.000000e+00> : vector<8xf32>
    %9 = vector.multi_reduction <add>, %5, %cst_9 [1] : vector<8x128xf32> to vector<8xf32>
    %10 = vector.shape_cast %9 : vector<8xf32> to vector<8x1xf32>
    %11 = vector.shape_cast %10 : vector<8x1xf32> to vector<1x8x1xf32>
    %12 = arith.addf %8, %11 : vector<1x8x1xf32>
    %c0_10 = arith.constant 0 : index
    %c0_11 = arith.constant 0 : index
    %c0_12 = arith.constant 0 : index
    %13 = vector.load %arg5[%c0_10, %c0_11, %c0_12] : memref<1x8x1xf32, #tpu.memory_space<vmem>>, vector<1x8x1xf32>
    tpu.vector_store %arg5[%c0_10, %c0_11, %c0_12], %12 {strides = array<i32>} : memref<1x8x1xf32, #tpu.memory_space<vmem>>, vector<1x8x1xf32>,
    %c0_13 = arith.constant 0 : index
    %c0_14 = arith.constant 0 : index
    %c0_15 = arith.constant 0 : index
    %14 = vector.load %arg6[%c0_13, %c0_14, %c0_15] : memref<1x8x1xf32, #tpu.memory_space<vmem>>, vector<1x8x1xf32>
    %15 = arith.mulf %5, %5 : vector<8x128xf32>
    %cst_16 = arith.constant dense<0.000000e+00> : vector<8xf32>
    %16 = vector.multi_reduction <add>, %15, %cst_16 [1] : vector<8x128xf32> to vector<8xf32>
    %17 = vector.shape_cast %16 : vector<8xf32> to vector<8x1xf32>
    %18 = vector.shape_cast %17 : vector<8x1xf32> to vector<1x8x1xf32>
    %19 = arith.addf %14, %18 : vector<1x8x1xf32>
    %c0_17 = arith.constant 0 : index
    %c0_18 = arith.constant 0 : index
    %c0_19 = arith.constant 0 : index
    %20 = vector.load %arg6[%c0_17, %c0_18, %c0_19] : memref<1x8x1xf32, #tpu.memory_space<vmem>>, vector<1x8x1xf32>
    tpu.vector_store %arg6[%c0_17, %c0_18, %c0_19], %19 {strides = array<i32>} : memref<1x8x1xf32, #tpu.memory_space<vmem>>, vector<1x8x1xf32>,
    return
  }
  func.func @transform_0(%arg0: i32, %arg1: i32) -> (i32, i32) {
    %c2_i32 = arith.constant 2 : i32
    %0 = arith.muli %arg0, %c2_i32 : i32
    %1 = arith.addi %0, %arg1 : i32
    %c0_i32 = arith.constant 0 : i32
    %c0_i32_0 = arith.constant 0 : i32
    return %c0_i32, %1 : i32, i32
  }
  func.func @transform_1(%arg0: i32, %arg1: i32) -> (i32, i32) {
    %c0_i32 = arith.constant 0 : i32
    %c0_i32_0 = arith.constant 0 : i32
    %c0_i32_1 = arith.constant 0 : i32
    return %c0_i32, %c0_i32_0 : i32, i32
  }
  func.func @transform_2(%arg0: i32, %arg1: i32) -> (i32, i32) {
    %c2_i32 = arith.constant 2 : i32
    %0 = arith.muli %arg0, %c2_i32 : i32
    %1 = arith.addi %0, %arg1 : i32
    %c0_i32 = arith.constant 0 : i32
    %c0_i32_0 = arith.constant 0 : i32
    return %c0_i32, %1 : i32, i32
  }
  func.func @transform_3(%arg0: i32, %arg1: i32) -> (i32, i32, i32) {
    %c0_i32 = arith.constant 0 : i32
    %c0_i32_0 = arith.constant 0 : i32
    %c0_i32_1 = arith.constant 0 : i32
    return %arg0, %c0_i32, %c0_i32_0 : i32, i32, i32
  }
  func.func @transform_4(%arg0: i32, %arg1: i32) -> (i32, i32, i32) {
    %c0_i32 = arith.constant 0 : i32
    %c0_i32_0 = arith.constant 0 : i32
    %c0_i32_1 = arith.constant 0 : i32
    return %arg0, %c0_i32, %c0_i32_0 : i32, i32, i32
  }
}

</mosaic_0001>

<llo_original>
// kernel: custom_cnn_layer.3
$region0: #{custom_cnn_layer.3}
  #allocation0 [shape = 'u32[]', space=smem, size = 0x4, offset = 0x4, fixed_abs, tag = 'smem constant byte address 0x4 - core index']
  #allocation1 [shape = 'u32[144,128]{1,0:T(1,128)}', space=vmem, size = 0x12000, scoped, tag = 'internal scratch']
  %s0 = inlined_call_operand.vmem [shape: bf16[8,512], index: 0, kind: input, shape index: {}]
  %s1 = inlined_call_operand.vmem [shape: f32[8,1], index: 1, kind: input, shape index: {}]
  %s2 = inlined_call_operand.vmem [shape: f32[8,1], index: 2, kind: input, shape index: {}]
  %s3 = inlined_call_operand.vmem [shape: f32[2,8,256], index: 3, kind: output, shape index: {}]
  %s4 = sld [smem:[#allocation0]]
  $region45: #{custom_cnn_layer.3} parent=0
    _
  %s6 = ssub.s32 1, %s4
  %s7 = scalar_select 0, %s6, %s4
  loop: start=0, step=1, limit=4
  $region2: #{custom_cnn_layer.3} parent=0 // loop_pre_header
    _
  $region3: #{custom_cnn_layer.3} parent=0 // loop_header
    %s9 = sphi 0, %s13
    %p10 = scmp.ge.s32.totalorder %s9, 4
    %s16 = sphi 0, %s28
    %s17 = sphi 0, %s24
    %s18 = sphi 0, %s16
    %s19 = sphi 0, %s17
    %s20 = sphi 0, %s18
    %s21 = sphi 0, %s19
    %s33 = sphi 0, %s35
    %s36 = sphi 0, %s33
    %s37 = sphi 0, %s36
    %s53 = sphi 0, %s37
    %s57 = sphi 0, %s57
    %s59 = sphi 0, %s57
    %s60 = sphi 0, %s59
    %s74 = sphi 0, %s60
    %s78 = sphi 0, %s78
    %s80 = sphi 0, %s78
    %s81 = sphi 0, %s80
    %s95 = sphi 0, %s81
    %s103 = sphi 0, %s105
    %s106 = sphi 0, %s103
    %s107 = sphi 0, %s106
    %s123 = sphi 0, %s107
  $region4: #{custom_cnn_layer.3} parent=0 // loop_header_branch
    %12 = sbr.rel (%p10) target = $region8
  $region5: #{custom_cnn_layer.3} parent=0 // loop_body
    %s14 = ssub.s32 %s9, 1
    %s15 = ssub.s32 %s9, 2
    %s22 = sadd.s32 1, %s17
    %p23 = scmp.ge.s32.totalorder %s22, 1
    %s24 = scalar_select %p23, 0, %s22
    %s25 = sadd.s32 1, %s16
    %s26 = scalar_select %p23, %s25, %s16
    %p27 = scmp.ge.s32.totalorder %s26, 2
    %s28 = scalar_select %p27, 0, %s26
    %s29 = sadd.s32 %s16, %s17
    %s30 = sadd.s32 %s28, %s24
    %s31 = ssub.s32 %s29, %s30
    %p32 = scmp.eq.s32.totalorder %s31, 0
    %s34 = sadd.s32 %s33, 1
    %s35 = scalar_select %p32, %s33, %s34
    %p38 = pneg %p32
    %p39 = scmp.eq.s32.totalorder %s9, 1
    %p40 = por %p38, %p39
    %p41 = scmp.ne.s32.totalorder %s33, %s36
    %p42 = scmp.eq.s32.totalorder %s9, 0
    %p43 = por %p41, %p42
    %p44 = scmp.ne.s32.totalorder %s33, %s36
    %p45 = scmp.eq.s32.totalorder %s14, 1
    %p46 = por %p44, %p45
    %p47 = scmp.ne.s32.totalorder %s36, %s37
    %p48 = scmp.eq.s32.totalorder %s14, 0
    %p49 = por %p47, %p48
    %p50 = scmp.ne.s32.totalorder %s36, %s37
    %p51 = scmp.eq.s32.totalorder %s15, 1
    %p52 = por %p50, %p51
    %p54 = scmp.ne.s32.totalorder %s37, %s53
    %p55 = scmp.eq.s32.totalorder %s15, 0
    %p56 = por %p54, %p55
    %s58 = sadd.s32 %s57, 1
    %p61 = scmp.eq.s32.totalorder %s9, 1
    %p62 = scmp.ne.s32.totalorder %s57, %s59
    %p63 = scmp.eq.s32.totalorder %s9, 0
    %p64 = por %p62, %p63
    %p65 = scmp.ne.s32.totalorder %s57, %s59
    %p66 = scmp.eq.s32.totalorder %s14, 1
    %p67 = por %p65, %p66
    %p68 = scmp.ne.s32.totalorder %s59, %s60
    %p69 = scmp.eq.s32.totalorder %s14, 0
    %p70 = por %p68, %p69
    %p71 = scmp.ne.s32.totalorder %s59, %s60
    %p72 = scmp.eq.s32.totalorder %s15, 1
    %p73 = por %p71, %p72
    %p75 = scmp.ne.s32.totalorder %s60, %s74
    %p76 = scmp.eq.s32.totalorder %s15, 0
    %p77 = por %p75, %p76
    %s79 = sadd.s32 %s78, 1
    %p82 = scmp.eq.s32.totalorder %s9, 1
    %p83 = scmp.ne.s32.totalorder %s78, %s80
    %p84 = scmp.eq.s32.totalorder %s9, 0
    %p85 = por %p83, %p84
    %p86 = scmp.ne.s32.totalorder %s78, %s80
    %p87 = scmp.eq.s32.totalorder %s14, 1
    %p88 = por %p86, %p87
    %p89 = scmp.ne.s32.totalorder %s80, %s81
    %p90 = scmp.eq.s32.totalorder %s14, 0
    %p91 = por %p89, %p90
    %p92 = scmp.ne.s32.totalorder %s80, %s81
    %p93 = scmp.eq.s32.totalorder %s15, 1
    %p94 = por %p92, %p93
    %p96 = scmp.ne.s32.totalorder %s81, %s95
    %p97 = scmp.eq.s32.totalorder %s15, 0
    %p98 = por %p96, %p97
    %s99 = ssub.s32 %s16, %s28
    %s100 = ssub.s32 %s17, %s24
    %s101 = sor.u32 %s99, %s100
    %p102 = scmp.eq.s32.totalorder %s101, 0
    %s104 = sadd.s32 %s103, 1
    %s105 = scalar_select %p102, %s103, %s104
    %p108 = pneg %p102
    %p109 = scmp.eq.s32.totalorder %s9, 1
    %p110 = por %p108, %p109
    %p111 = scmp.ne.s32.totalorder %s103, %s106
    %p112 = scmp.eq.s32.totalorder %s9, 0
    %p113 = por %p111, %p112
    %p114 = scmp.ne.s32.totalorder %s103, %s106
    %p115 = scmp.eq.s32.totalorder %s14, 1
    %p116 = por %p114, %p115
    %p117 = scmp.ne.s32.totalorder %s106, %s107
    %p118 = scmp.eq.s32.totalorder %s14, 0
    %p119 = por %p117, %p118
    %p120 = scmp.ne.s32.totalorder %s106, %s107
    %p121 = scmp.eq.s32.totalorder %s15, 1
    %p122 = por %p120, %p121
    %p124 = scmp.ne.s32.totalorder %s107, %s123
    %p125 = scmp.eq.s32.totalorder %s15, 0
    %p126 = por %p124, %p125
    %p127 = scmp.le.s32.totalorder 1, %s9
    %p128 = scmp.lt.s32.totalorder %s9, 3
    %p129 = pnand %p127, %p128
    %p130 = pneg %p129
    // Predicated region
    $region9: #{custom_cnn_layer.3} parent=5 // pred_check
      _
    $region10: #{custom_cnn_layer.3} parent=5 // pred_check_branch
      %132 = sbr.rel (%p129) target = $region12
    $region11: #{custom_cnn_layer.3} parent=5 // pred_region
      %s133 = ssub.s32 %s9, 1
      // Predicated region
      $region13: #{custom_cnn_layer.3} parent=11 // pred_check
        %p134 = pneg %p70
      $region14: #{custom_cnn_layer.3} parent=11 // pred_check_branch
        %136 = sbr.rel (%p134) target = $region16
      $region15: #{custom_cnn_layer.3} parent=11 // pred_region
        _
      $region16: #{custom_cnn_layer.3} parent=11 // pred_fallthru
        _
      // Predicated region
      $region17: #{custom_cnn_layer.3} parent=11 // pred_check
        %p137 = pneg %p91
      $region18: #{custom_cnn_layer.3} parent=11 // pred_check_branch
        %139 = sbr.rel (%p137) target = $region20
      $region19: #{custom_cnn_layer.3} parent=11 // pred_region
        _
      $region20: #{custom_cnn_layer.3} parent=11 // pred_fallthru
        _
    $region12: #{custom_cnn_layer.3} parent=5 // pred_fallthru
      _
    %p140 = scmp.lt.s32.totalorder %s9, 2
    // Predicated region
    $region21: #{custom_cnn_layer.3} parent=5 // pred_check
      %p141 = pneg %p140
    $region22: #{custom_cnn_layer.3} parent=5 // pred_check_branch
      %143 = sbr.rel (%p141) target = $region24
    $region23: #{custom_cnn_layer.3} parent=5 // pred_region
      // Predicated region
      $region25: #{custom_cnn_layer.3} parent=23 // pred_check
        %p144 = pneg %p43
      $region26: #{custom_cnn_layer.3} parent=23 // pred_check_branch
        %146 = sbr.rel (%p144) target = $region28
      $region27: #{custom_cnn_layer.3} parent=23 // pred_region
        %s147 = sadd.s32 %s16, %s17
        %s148 = smul.u32 2, %s147
        %p149 = scmp.lt.s32.totalorder %s148, 3
        %s150 = scalar_select %p149, %s148, 3
        %s151 = smul.addr %s150, 4
        %s152 = scalar_lea.vmem %s0, %s151
        %s153 = sadd.s32 %s16, %s17
        %s154 = smul.u32 2, %s153
      $region28: #{custom_cnn_layer.3} parent=23 // pred_fallthru
        _
    $region24: #{custom_cnn_layer.3} parent=5 // pred_fallthru
      _
    %p155 = scmp.le.s32.totalorder 1, %s9
    %p156 = scmp.lt.s32.totalorder %s9, 3
    %p157 = pnand %p155, %p156
    %p158 = pneg %p157
    // Predicated region
    $region29: #{custom_cnn_layer.3} parent=5 // pred_check
      _
    $region30: #{custom_cnn_layer.3} parent=5 // pred_check_branch
      %160 = sbr.rel (%p157) target = $region32
    $region31: #{custom_cnn_layer.3} parent=5 // pred_region
      %s161 = ssub.s32 %s9, 1
      %s162 = sadd.s32 %s18, %s19
      %s163 = smul.u32 2, %s162
      %p164 = scmp.lt.s32.totalorder %s163, 3
      %s165 = scalar_select %p164, %s163, 3
      %s166 = smul.addr %s165, 4
      %s167 = scalar_lea.vmem %s0, %s166
      %p168 = pneg %p49
      %p169 = pneg %p46
      %p170 = pneg %p70
      %p171 = pneg %p67
      %p172 = pneg %p91
      %p173 = pneg %p88
      %p174 = pneg %p119
      %p175 = pneg %p116
      %s176 = smul.u32 2, %s19
      %p177 = scmp.lt.s32.totalorder %s18, 1
      %s178 = scalar_select %p177, %s18, 1
      %p179 = scmp.lt.s32.totalorder %s176, 1
      %s180 = scalar_select %p179, %s176, 1
      %s181 = smul.addr %s178, 2
      %s182 = sadd.s32 %s180, %s181
      %s183 = smul.addr %s182, 8
      %s184 = scalar_lea.vmem %s3, %s183
      %s185 = sadd.s32 %s18, %s19
      %s186 = smul.u32 2, %s185
      %p187 = scmp.lt.s32.totalorder %s186, 3
      %s188 = scalar_select %p187, %s186, 3
      %s189 = smul.addr %s188, 4
      %s190 = scalar_lea.vmem %s0, %s189
      %s191 = sadd.s32 %s18, %s19
      %s192 = smul.u32 2, %s191
      %s193 = smul.u32 2, %s19
      %p194 = scmp.lt.s32.totalorder %s18, 1
      %s195 = scalar_select %p194, %s18, 1
      %p196 = scmp.lt.s32.totalorder %s193, 1
      %s197 = scalar_select %p196, %s193, 1
      %s198 = smul.addr %s195, 2
      %s199 = sadd.s32 %s197, %s198
      %s200 = smul.addr %s199, 8
      %s201 = scalar_lea.vmem %s3, %s200
      %s202 = smul.u32 2, %s19
      %v203 = vld [vmem:[%s190] sm:$0xff]
      %v204 = vunpack.c.l.bf16 %v203
      %v205 = vunpack.c.h.bf16 %v203
      %v206 = vld [vmem:[%s1] sm:$0xff]
      %208 = vset.pattern.permute.xlu0 0
      %209 = vperm.xlu0 %208, %v206
      %v210 = vpop.permute.xlu0 %209
      %v212 = vmul.f32 %v204, %v210
      %v213 = vmul.f32 %v205, %v210
      %v214 = vld [vmem:[%s2] sm:$0xff]
      %216 = vset.pattern.permute.xlu0 0
      %217 = vperm.xlu0 %216, %v214
      %v218 = vpop.permute.xlu0 %217
      %v220 = vadd.f32 %v212, %v218
      %v221 = vadd.f32 %v213, %v218
      %v222 = vmax.f32 %v220, 0.0
      %v223 = vmax.f32 %v221, 0.0
      %224 = vst [vmem:[%s201] sm:$0xff] %v222
      %225 = vst [vmem:[%s201 + $0x8] sm:$0xff] %v223
      %s226 = smul.u32 2, %s19
      %p227 = scmp.lt.s32.totalorder %s18, 1
      %s228 = scalar_select %p227, %s18, 1
      %p229 = scmp.lt.s32.totalorder %s226, 1
      %s230 = scalar_select %p229, %s226, 1
      %s231 = smul.addr %s228, 2
      %s232 = sadd.s32 %s230, %s231
      %s233 = smul.addr %s232, 8
      %s234 = scalar_lea.vmem %s3, %s233
      // Predicated region
      $region33: #{custom_cnn_layer.3} parent=31 // pred_check
        %p235 = pneg %p116
      $region34: #{custom_cnn_layer.3} parent=31 // pred_check_branch
        %237 = sbr.rel (%p235) target = $region36
      $region35: #{custom_cnn_layer.3} parent=31 // pred_region
        %s238 = smul.u32 2, %s19
      $region36: #{custom_cnn_layer.3} parent=31 // pred_fallthru
        _
    $region32: #{custom_cnn_layer.3} parent=5 // pred_fallthru
      _
    %p239 = scmp.le.s32.totalorder 2, %s9
    // Predicated region
    $region37: #{custom_cnn_layer.3} parent=5 // pred_check
      %p240 = pneg %p239
    $region38: #{custom_cnn_layer.3} parent=5 // pred_check_branch
      %242 = sbr.rel (%p240) target = $region40
    $region39: #{custom_cnn_layer.3} parent=5 // pred_region
      %s243 = ssub.s32 %s9, 2
      // Predicated region
      $region41: #{custom_cnn_layer.3} parent=39 // pred_check
        %p244 = pneg %p122
      $region42: #{custom_cnn_layer.3} parent=39 // pred_check_branch
        %246 = sbr.rel (%p244) target = $region44
      $region43: #{custom_cnn_layer.3} parent=39 // pred_region
        %s247 = smul.u32 2, %s21
        %p248 = scmp.lt.s32.totalorder %s20, 1
        %s249 = scalar_select %p248, %s20, 1
        %p250 = scmp.lt.s32.totalorder %s247, 1
        %s251 = scalar_select %p250, %s247, 1
        %s252 = smul.addr %s249, 2
        %s253 = sadd.s32 %s251, %s252
        %s254 = smul.addr %s253, 8
        %s255 = scalar_lea.vmem %s3, %s254
      $region44: #{custom_cnn_layer.3} parent=39 // pred_fallthru
        _
    $region40: #{custom_cnn_layer.3} parent=5 // pred_fallthru
      _
  $region6: #{custom_cnn_layer.3} parent=0 // loop_footer
    %s13 = sadd.s32 1, %s9
  $region7: #{custom_cnn_layer.3} parent=0 // loop_footer_branch
    %8 = sbr.rel target = $region3
  $region8: #{custom_cnn_layer.3} parent=0 // loop_exit
    _

// kernel: custom_cnn_layer.2
$region0: #{custom_cnn_layer.2}
  #allocation0 [shape = 'u32[]', space=smem, size = 0x4, offset = 0x4, fixed_abs, tag = 'smem constant byte address 0x4 - core index']
  #allocation1 [shape = 'u32[144,128]{1,0:T(1,128)}', space=vmem, size = 0x12000, scoped, tag = 'internal scratch']
  %s0 = inlined_call_operand.vmem [shape: bf16[48,512], index: 0, kind: input, shape index: {}]
  %s1 = inlined_call_operand.vmem [shape: bf16[8,48], index: 1, kind: input, shape index: {}]
  %s2 = inlined_call_operand.vmem [shape: bf16[8,512], index: 2, kind: output, shape index: {0}]
  %s3 = inlined_call_operand.vmem [shape: f32[2,8,1], index: 3, kind: output, shape index: {1}]
  %s4 = inlined_call_operand.vmem [shape: f32[2,8,1], index: 4, kind: output, shape index: {2}]
  %5 = xla_tuple %s2, %s3, %s4
  %s6 = sld [smem:[#allocation0]]
  $region102: #{custom_cnn_layer.2} parent=0
    _
  %s8 = ssub.s32 1, %s6
  %s9 = scalar_select 0, %s8, %s6
  $region1: #{custom_cnn_layer.2} parent=0
    #allocation2 [shape = 'u8[24576]{0}', space=vmem, size = 0x6000, scoped, tag = 'input window, operand 0']
    loop: start=0, step=1, limit=6
    $region2: #{custom_cnn_layer.2} parent=1 // loop_pre_header
      _
    $region3: #{custom_cnn_layer.2} parent=1 // loop_header
      %s11 = sphi 0, %s15
      %p12 = scmp.ge.s32.totalorder %s11, 6
      %s18 = sphi 0, %s30
      %s19 = sphi 0, %s26
      %s20 = sphi 0, %s18
      %s21 = sphi 0, %s19
      %s22 = sphi 0, %s20
      %s23 = sphi 0, %s21
      %s37 = sphi 0, %s39
      %s40 = sphi 0, %s37
      %s41 = sphi 0, %s40
      %s57 = sphi 0, %s41
      %s61 = sphi 0, %s61
      %s63 = sphi 0, %s61
      %s64 = sphi 0, %s63
      %s78 = sphi 0, %s64
      %s88 = sphi 0, %s90
      %s91 = sphi 0, %s88
      %s92 = sphi 0, %s91
      %s108 = sphi 0, %s92
      %s114 = sphi 0, %s116
      %s117 = sphi 0, %s114
      %s118 = sphi 0, %s117
      %s134 = sphi 0, %s118
      %s140 = sphi 0, %s142
      %s143 = sphi 0, %s140
      %s144 = sphi 0, %s143
      %s160 = sphi 0, %s144
    $region4: #{custom_cnn_layer.2} parent=1 // loop_header_branch
      %14 = sbr.rel (%p12) target = $region8
    $region5: #{custom_cnn_layer.2} parent=1 // loop_body
      %s16 = ssub.s32 %s11, 1
      %s17 = ssub.s32 %s11, 2
      %s24 = sadd.s32 1, %s19
      %p25 = scmp.ge.s32.totalorder %s24, 2
      %s26 = scalar_select %p25, 0, %s24
      %s27 = sadd.s32 1, %s18
      %s28 = scalar_select %p25, %s27, %s18
      %p29 = scmp.ge.s32.totalorder %s28, 2
      %s30 = scalar_select %p29, 0, %s28
      %s31 = smul.u32 %s18, 2
      %s32 = sadd.s32 %s31, %s19
      %s33 = smul.u32 %s30, 2
      %s34 = sadd.s32 %s33, %s26
      %s35 = ssub.s32 %s32, %s34
      %p36 = scmp.eq.s32.totalorder %s35, 0
      %s38 = sadd.s32 %s37, 1
      %s39 = scalar_select %p36, %s37, %s38
      %p42 = pneg %p36
      %p43 = scmp.eq.s32.totalorder %s11, 3
      %p44 = por %p42, %p43
      %p45 = scmp.ne.s32.totalorder %s37, %s40
      %p46 = scmp.eq.s32.totalorder %s11, 0
      %p47 = por %p45, %p46
      %p48 = scmp.ne.s32.totalorder %s37, %s40
      %p49 = scmp.eq.s32.totalorder %s16, 3
      %p50 = por %p48, %p49
      %p51 = scmp.ne.s32.totalorder %s40, %s41
      %p52 = scmp.eq.s32.totalorder %s16, 0
      %p53 = por %p51, %p52
      %p54 = scmp.ne.s32.totalorder %s40, %s41
      %p55 = scmp.eq.s32.totalorder %s17, 3
      %p56 = por %p54, %p55
      %p58 = scmp.ne.s32.totalorder %s41, %s57
      %p59 = scmp.eq.s32.totalorder %s17, 0
      %p60 = por %p58, %p59
      %s62 = sadd.s32 %s61, 1
      %p65 = scmp.eq.s32.totalorder %s11, 3
      %p66 = scmp.ne.s32.totalorder %s61, %s63
      %p67 = scmp.eq.s32.totalorder %s11, 0
      %p68 = por %p66, %p67
      %p69 = scmp.ne.s32.totalorder %s61, %s63
      %p70 = scmp.eq.s32.totalorder %s16, 3
      %p71 = por %p69, %p70
      %p72 = scmp.ne.s32.totalorder %s63, %s64
      %p73 = scmp.eq.s32.totalorder %s16, 0
      %p74 = por %p72, %p73
      %p75 = scmp.ne.s32.totalorder %s63, %s64
      %p76 = scmp.eq.s32.totalorder %s17, 3
      %p77 = por %p75, %p76
      %p79 = scmp.ne.s32.totalorder %s64, %s78
      %p80 = scmp.eq.s32.totalorder %s17, 0
      %p81 = por %p79, %p80
      %s82 = smul.u32 %s18, 2
      %s83 = sadd.s32 %s82, %s19
      %s84 = smul.u32 %s30, 2
      %s85 = sadd.s32 %s84, %s26
      %s86 = ssub.s32 %s83, %s85
      %p87 = scmp.eq.s32.totalorder %s86, 0
      %s89 = sadd.s32 %s88, 1
      %s90 = scalar_select %p87, %s88, %s89
      %p93 = pneg %p87
      %p94 = scmp.eq.s32.totalorder %s11, 3
      %p95 = por %p93, %p94
      %p96 = scmp.ne.s32.totalorder %s88, %s91
      %p97 = scmp.eq.s32.totalorder %s11, 0
      %p98 = por %p96, %p97
      %p99 = scmp.ne.s32.totalorder %s88, %s91
      %p100 = scmp.eq.s32.totalorder %s16, 3
      %p101 = por %p99, %p100
      %p102 = scmp.ne.s32.totalorder %s91, %s92
      %p103 = scmp.eq.s32.totalorder %s16, 0
      %p104 = por %p102, %p103
      %p105 = scmp.ne.s32.totalorder %s91, %s92
      %p106 = scmp.eq.s32.totalorder %s17, 3
      %p107 = por %p105, %p106
      %p109 = scmp.ne.s32.totalorder %s92, %s108
      %p110 = scmp.eq.s32.totalorder %s17, 0
      %p111 = por %p109, %p110
      %s112 = ssub.s32 %s18, %s30
      %p113 = scmp.eq.s32.totalorder %s112, 0
      %s115 = sadd.s32 %s114, 1
      %s116 = scalar_select %p113, %s114, %s115
      %p119 = pneg %p113
      %p120 = scmp.eq.s32.totalorder %s11, 3
      %p121 = por %p119, %p120
      %p122 = scmp.ne.s32.totalorder %s114, %s117
      %p123 = scmp.eq.s32.totalorder %s11, 0
      %p124 = por %p122, %p123
      %p125 = scmp.ne.s32.totalorder %s114, %s117
      %p126 = scmp.eq.s32.totalorder %s16, 3
      %p127 = por %p125, %p126
      %p128 = scmp.ne.s32.totalorder %s117, %s118
      %p129 = scmp.eq.s32.totalorder %s16, 0
      %p130 = por %p128, %p129
      %p131 = scmp.ne.s32.totalorder %s117, %s118
      %p132 = scmp.eq.s32.totalorder %s17, 3
      %p133 = por %p131, %p132
      %p135 = scmp.ne.s32.totalorder %s118, %s134
      %p136 = scmp.eq.s32.totalorder %s17, 0
      %p137 = por %p135, %p136
      %s138 = ssub.s32 %s18, %s30
      %p139 = scmp.eq.s32.totalorder %s138, 0
      %s141 = sadd.s32 %s140, 1
      %s142 = scalar_select %p139, %s140, %s141
      %p145 = pneg %p139
      %p146 = scmp.eq.s32.totalorder %s11, 3
      %p147 = por %p145, %p146
      %p148 = scmp.ne.s32.totalorder %s140, %s143
      %p149 = scmp.eq.s32.totalorder %s11, 0
      %p150 = por %p148, %p149
      %p151 = scmp.ne.s32.totalorder %s140, %s143
      %p152 = scmp.eq.s32.totalorder %s16, 3
      %p153 = por %p151, %p152
      %p154 = scmp.ne.s32.totalorder %s143, %s144
      %p155 = scmp.eq.s32.totalorder %s16, 0
      %p156 = por %p154, %p155
      %p157 = scmp.ne.s32.totalorder %s143, %s144
      %p158 = scmp.eq.s32.totalorder %s17, 3
      %p159 = por %p157, %p158
      %p161 = scmp.ne.s32.totalorder %s144, %s160
      %p162 = scmp.eq.s32.totalorder %s17, 0
      %p163 = por %p161, %p162
      %p164 = scmp.le.s32.totalorder 1, %s11
      %p165 = scmp.lt.s32.totalorder %s11, 5
      %p166 = pnand %p164, %p165
      %p167 = pneg %p166
      // Predicated region
      $region9: #{custom_cnn_layer.2} parent=5 // pred_check
        _
      $region10: #{custom_cnn_layer.2} parent=5 // pred_check_branch
        %169 = sbr.rel (%p166) target = $region12
      $region11: #{custom_cnn_layer.2} parent=5 // pred_region
        %s170 = ssub.s32 %s11, 1
        // Predicated region
        $region13: #{custom_cnn_layer.2} parent=11 // pred_check
          %p171 = pneg %p74
        $region14: #{custom_cnn_layer.2} parent=11 // pred_check_branch
          %173 = sbr.rel (%p171) target = $region16
        $region15: #{custom_cnn_layer.2} parent=11 // pred_region
          _
        $region16: #{custom_cnn_layer.2} parent=11 // pred_fallthru
          _
      $region12: #{custom_cnn_layer.2} parent=5 // pred_fallthru
        _
      %p174 = scmp.lt.s32.totalorder %s11, 4
      // Predicated region
      $region17: #{custom_cnn_layer.2} parent=5 // pred_check
        %p175 = pneg %p174
      $region18: #{custom_cnn_layer.2} parent=5 // pred_check_branch
        %177 = sbr.rel (%p175) target = $region20
      $region19: #{custom_cnn_layer.2} parent=5 // pred_region
        // Predicated region
        $region21: #{custom_cnn_layer.2} parent=19 // pred_check
          %p178 = pneg %p47
        $region22: #{custom_cnn_layer.2} parent=19 // pred_check_branch
          %180 = sbr.rel (%p178) target = $region24
        $region23: #{custom_cnn_layer.2} parent=19 // pred_region
          %s181 = sand.u32 %s37, 1
          %s182 = sand.u32 %s37, 1
          %s183 = smul.addr %s182, 24
          %s184 = scalar_lea.vmem [#allocation2], %s183
          %s185 = smul.u32 %s18, 2
          %s186 = sadd.s32 %s185, %s19
          %s187 = smul.addr %s186, 4
          %s188 = scalar_lea.vmem %s0, %s187
          // Predicated region
          $region25: #{custom_cnn_layer.2} parent=23 // pred_check
            _
          $region26: #{custom_cnn_layer.2} parent=23 // pred_check_branch
            %190 = sbr.rel (0) target = $region28
          $region27: #{custom_cnn_layer.2} parent=23 // pred_region
            // Predicated region
            $region29: #{custom_cnn_layer.2} parent=27 // pred_check
              _
            $region30: #{custom_cnn_layer.2} parent=27 // pred_check_branch
              %192 = sbr.rel target = $region32
            $region31: #{custom_cnn_layer.2} parent=27 // pred_region
              // Predicated region
              $region44: #{custom_cnn_layer.2} parent=31 // pred_check
                _
              $region45: #{custom_cnn_layer.2} parent=31 // pred_check_branch
                %218 = sbr.rel (0) target = $region47
              $region46: #{custom_cnn_layer.2} parent=31 // pred_region
                loop: start=0, step=1, limit=1
                $region48: #{custom_cnn_layer.2} parent=46 // loop_pre_header
                  _
                $region49: #{custom_cnn_layer.2} parent=46 // loop_header
                  %s220 = sphi 0, %s224
                  %p221 = scmp.ge.s32.totalorder %s220, 1
                  %s225 = sphi %s188, %s188
                  %s226 = sphi %s184, %s184
                $region50: #{custom_cnn_layer.2} parent=46 // loop_header_branch
                  %223 = sbr.rel (%p221) target = $region54
                $region51: #{custom_cnn_layer.2} parent=46 // loop_body
                  _
                $region52: #{custom_cnn_layer.2} parent=46 // loop_footer
                  %s224 = sadd.s32 1, %s220
                $region53: #{custom_cnn_layer.2} parent=46 // loop_footer_branch
                  %219 = sbr.rel target = $region49
                $region54: #{custom_cnn_layer.2} parent=46 // loop_exit
                  _
                %s228 = ssub.s32 16, 1
                loop: start=0, step=1, limit=1
                $region55: #{custom_cnn_layer.2} parent=46 // loop_pre_header
                  _
                $region56: #{custom_cnn_layer.2} parent=46 // loop_header
                  %s230 = sphi 0, %s234
                  %p231 = scmp.ge.s32.totalorder %s230, 1
                  %s235 = sphi %s188, %s188
                  %s236 = sphi %s184, %s184
                $region57: #{custom_cnn_layer.2} parent=46 // loop_header_branch
                  %233 = sbr.rel (%p231) target = $region61
                $region58: #{custom_cnn_layer.2} parent=46 // loop_body
                  %v237 = vld [vmem:[%s235] sm:%s228]
                  %238 = vst [vmem:[%s236] sm:%s228] %v237
                  %v239 = vld [vmem:[%s235 + $0x10] sm:%s228]
                  %240 = vst [vmem:[%s236 + $0x4] sm:%s228] %v239
                  %v241 = vld [vmem:[%s235 + $0x20] sm:%s228]
                  %242 = vst [vmem:[%s236 + $0x8] sm:%s228] %v241
                  %v243 = vld [vmem:[%s235 + $0x30] sm:%s228]
                  %244 = vst [vmem:[%s236 + $0xc] sm:%s228] %v243
                  %v245 = vld [vmem:[%s235 + $0x40] sm:%s228]
                  %246 = vst [vmem:[%s236 + $0x10] sm:%s228] %v245
                  %v247 = vld [vmem:[%s235 + $0x50] sm:%s228]
                  %248 = vst [vmem:[%s236 + $0x14] sm:%s228] %v247
                $region59: #{custom_cnn_layer.2} parent=46 // loop_footer
                  %s234 = sadd.s32 1, %s230
                $region60: #{custom_cnn_layer.2} parent=46 // loop_footer_branch
                  %229 = sbr.rel target = $region56
                $region61: #{custom_cnn_layer.2} parent=46 // loop_exit
                  _
              $region47: #{custom_cnn_layer.2} parent=31 // pred_fallthru
                _
            $region32: #{custom_cnn_layer.2} parent=27 // pred_fallthru
              _
            // Predicated region
            $region33: #{custom_cnn_layer.2} parent=27 // pred_check
              _
            $region34: #{custom_cnn_layer.2} parent=27 // pred_check_branch
              %194 = sbr.rel (0) target = $region36
            $region35: #{custom_cnn_layer.2} parent=27 // pred_region
              %s196 = ssub.s32 16, 1
              loop: start=0, step=1, limit=1
              $region37: #{custom_cnn_layer.2} parent=35 // loop_pre_header
                _
              $region38: #{custom_cnn_layer.2} parent=35 // loop_header
                %s198 = sphi 0, %s202
                %p199 = scmp.ge.s32.totalorder %s198, 1
                %s203 = sphi %s188, %s188
                %s204 = sphi %s184, %s184
              $region39: #{custom_cnn_layer.2} parent=35 // loop_header_branch
                %201 = sbr.rel (%p199) target = $region43
              $region40: #{custom_cnn_layer.2} parent=35 // loop_body
                %v205 = vld [vmem:[%s203] sm:%s196]
                %206 = vst [vmem:[%s204] sm:%s196] %v205
                %v207 = vld [vmem:[%s203 + $0x10] sm:%s196]
                %208 = vst [vmem:[%s204 + $0x4] sm:%s196] %v207
                %v209 = vld [vmem:[%s203 + $0x20] sm:%s196]
                %210 = vst [vmem:[%s204 + $0x8] sm:%s196] %v209
                %v211 = vld [vmem:[%s203 + $0x30] sm:%s196]
                %212 = vst [vmem:[%s204 + $0xc] sm:%s196] %v211
                %v213 = vld [vmem:[%s203 + $0x40] sm:%s196]
                %214 = vst [vmem:[%s204 + $0x10] sm:%s196] %v213
                %v215 = vld [vmem:[%s203 + $0x50] sm:%s196]
                %216 = vst [vmem:[%s204 + $0x14] sm:%s196] %v215
              $region41: #{custom_cnn_layer.2} parent=35 // loop_footer
                %s202 = sadd.s32 1, %s198
              $region42: #{custom_cnn_layer.2} parent=35 // loop_footer_branch
                %197 = sbr.rel target = $region38
              $region43: #{custom_cnn_layer.2} parent=35 // loop_exit
                _
            $region36: #{custom_cnn_layer.2} parent=27 // pred_fallthru
              _
          $region28: #{custom_cnn_layer.2} parent=23 // pred_fallthru
            _
          %249 = vnop
        $region24: #{custom_cnn_layer.2} parent=19 // pred_fallthru
          _
      $region20: #{custom_cnn_layer.2} parent=5 // pred_fallthru
        _
      %p250 = scmp.le.s32.totalorder 1, %s11
      %p251 = scmp.lt.s32.totalorder %s11, 5
      %p252 = pnand %p250, %p251
      %p253 = pneg %p252
      // Predicated region
      $region62: #{custom_cnn_layer.2} parent=5 // pred_check
        _
      $region63: #{custom_cnn_layer.2} parent=5 // pred_check_branch
        %255 = sbr.rel (%p252) target = $region65
      $region64: #{custom_cnn_layer.2} parent=5 // pred_region
        %s256 = ssub.s32 %s11, 1
        %s257 = sand.u32 %s40, 1
        %s258 = sand.u32 %s40, 1
        %s259 = smul.addr %s258, 24
        %s260 = scalar_lea.vmem [#allocation2], %s259
        // Predicated region
        $region66: #{custom_cnn_layer.2} parent=64 // pred_check
          %p261 = pneg %p53
        $region67: #{custom_cnn_layer.2} parent=64 // pred_check_branch
          %263 = sbr.rel (%p261) target = $region69
        $region68: #{custom_cnn_layer.2} parent=64 // pred_region
          _
        $region69: #{custom_cnn_layer.2} parent=64 // pred_fallthru
          _
        %s264 = sand.u32 %s40, 1
        %s265 = sand.u32 %s40, 1
        %s266 = smul.addr %s265, 24
        %s267 = scalar_lea.vmem [#allocation2], %s266
        %p268 = pneg %p53
        %p269 = pneg %p50
        %p270 = pneg %p74
        %p271 = pneg %p71
        %p272 = pneg %p104
        %p273 = pneg %p101
        %s274 = smul.u32 %s20, 2
        %s275 = sadd.s32 %s274, %s21
        %p276 = scmp.lt.s32.totalorder %s275, 3
        %s277 = scalar_select %p276, %s275, 3
        %s278 = smul.addr %s277, 4
        %s279 = scalar_lea.vmem %s2, %s278
        %p280 = pneg %p130
        %p281 = pneg %p127
        %p282 = scmp.lt.s32.totalorder %s20, 1
        %s283 = scalar_select %p282, %s20, 1
        %s284 = smul.addr %s283, 8
        %s285 = scalar_lea.vmem %s3, %s284
        %p286 = pneg %p156
        %p287 = pneg %p153
        %p288 = scmp.lt.s32.totalorder %s20, 1
        %s289 = scalar_select %p288, %s20, 1
        %s290 = smul.addr %s289, 8
        %s291 = scalar_lea.vmem %s4, %s290
        %s292 = smul.u32 %s20, 2
        %s293 = sadd.s32 %s292, %s21
        %s294 = smul.u32 %s20, 2
        %s295 = sadd.s32 %s294, %s21
        %p296 = scmp.lt.s32.totalorder %s295, 3
        %s297 = scalar_select %p296, %s295, 3
        %s298 = smul.addr %s297, 4
        %s299 = scalar_lea.vmem %s2, %s298
        %s300 = smul.u32 %s20, 2
        %s301 = sadd.s32 %s300, %s21
        %p302 = scmp.lt.s32.totalorder %s20, 1
        %s303 = scalar_select %p302, %s20, 1
        %s304 = smul.addr %s303, 8
        %s305 = scalar_lea.vmem %s3, %s304
        %p306 = scmp.lt.s32.totalorder %s20, 1
        %s307 = scalar_select %p306, %s20, 1
        %s308 = smul.addr %s307, 8
        %s309 = scalar_lea.vmem %s4, %s308
        %p311 = scmp.eq.s32.totalorder %s21, 0
        // Predicated region
        $region70: #{custom_cnn_layer.2} parent=64 // pred_check
          %p312 = pneg %p311
        $region71: #{custom_cnn_layer.2} parent=64 // pred_check_branch
          %314 = sbr.rel (%p312) target = $region73
        $region72: #{custom_cnn_layer.2} parent=64 // pred_region
          %vm315 = vcmask 7168
          %316 = vst.msk [vmem:[%s305] sm:$0xff] %vm315, 0.0
          %317 = vst.msk [vmem:[%s309] sm:$0xff] %vm315, 0.0
        $region73: #{custom_cnn_layer.2} parent=64 // pred_fallthru
          _
        %v318 = vld [vmem:[%s1] sm:$0xf]
        %v319 = vld [vmem:[%s260] sm:$0xf]
        %v320 = vld [vmem:[%s260 + $0x4] sm:$0xf]
        %v321 = vld [vmem:[%s260 + $0x8] sm:$0xf]
        %v322 = vld [vmem:[%s260 + $0xc] sm:$0xf]
        %v323 = vld [vmem:[%s260 + $0x10] sm:$0xf]
        %v324 = vld [vmem:[%s260 + $0x14] sm:$0xf]
        %v331 = vunpack.c.l.b16 %v319
        %v332 = vunpack.c.l.b16 %v320
        %v333 = vunpack.c.l.b16 %v321
        %v334 = vunpack.c.l.b16 %v322
        %v335 = vunpack.c.l.b16 %v323
        %v336 = vunpack.c.l.b16 %v324
        %v337 = vpack.c.b16 %v332, %v331
        %v338 = vpack.c.b16 %v334, %v333
        %v339 = vpack.c.b16 %v336, %v335
        %vm343 = vcmask 392192
        %v345 = vsel %vm343, %v318, 0
        %347 = vmatprep.subr.bf16.mxu0 0
        %348 = vmatpush1.bf16.msra.mxu0 0
        %349 = vmatprep.subr.bf16.mxu0 0
        %350 = vmatpush1.bf16.msra.mxu0 0
        %351 = vmatprep.subr.bf16.mxu0 0
        %352 = vmatpush1.bf16.msra.mxu0 0
        %353 = vmatprep.subr.bf16.mxu0 0
        %354 = vmatpush1.bf16.msra.mxu0 0
        %355 = vmatprep.subr.bf16.mxu0 0
        %356 = vmatpush1.bf16.msra.mxu0 0
        %357 = vmatprep.subr.bf16.mxu0 0
        %358 = vmatpush1.bf16.msra.mxu0 %v339
        %359 = vmatprep.subr.bf16.mxu0 0
        %360 = vmatpush1.bf16.msra.mxu0 %v338
        %361 = vmatprep.subr.bf16.mxu0 0
        %362 = vmatpush1.bf16.msra.mxu0 %v337
        %363 = vmatprep.subr.bf16.mxu0 0
        %364 = vmatpush2.bf16.msra.mxu0 0
        %365 = vmatprep.subr.bf16.mxu0 0
        %366 = vmatpush2.bf16.msra.mxu0 0
        %367 = vmatprep.subr.bf16.mxu0 0
        %368 = vmatpush2.bf16.msra.mxu0 0
        %369 = vmatprep.subr.bf16.mxu0 0
        %370 = vmatpush2.bf16.msra.mxu0 0
        %371 = vmatprep.subr.bf16.mxu0 0
        %372 = vmatpush2.bf16.msra.mxu0 0
        %373 = vmatprep.subr.bf16.mxu0 0
        %374 = vmatpush2.bf16.msra.mxu0 0
        %375 = vmatprep.subr.bf16.mxu0 0
        %376 = vmatpush2.bf16.msra.mxu0 0
        %377 = vmatprep.subr.bf16.mxu0 0
        %378 = vmatpush2.bf16.msra.mxu0 0
        %379 = vmatprep.mubr.bf16.mxu0 0
        %380 = vmatmul.mubr.bf16.gmra.mxu0 %v345
        %v381 = vpop.f32.mrf.mxu0
        %v382 = vadd.f32 0.0, %v381
        %v383 = vpop.f32.mrf.mxu0
        %v384 = vpop.f32.mrf.mxu0
        %v385 = vpop.f32.mrf.mxu0
        %386 = vdwg.mxu0
        %v387 = vpack.c.bf16 %v382, %v382
        %388 = vst [vmem:[%s299] sm:$0xf] %v387
        %v389 = vld [vmem:[%s305] sm:$0xff]
        %390 = vadd.xlane.f32.xlu0 %v382
        %v391 = vpop.xlane.xlu0 %390
        %v392 = vadd.f32 %v389, %v391
        %vm393 = vcmask 7168
        %394 = vst.msk [vmem:[%s305] sm:$0xff] %vm393, %v392
        %v395 = vld [vmem:[%s309] sm:$0xff]
        %v396 = vmul.f32 %v382, %v382
        %397 = vadd.xlane.f32.xlu0 %v396
        %v398 = vpop.xlane.xlu0 %397
        %v399 = vadd.f32 %v395, %v398
        %400 = vst.msk [vmem:[%s309] sm:$0xff] %vm393, %v399
        %s401 = smul.u32 %s20, 2
        %s402 = sadd.s32 %s401, %s21
        %p403 = scmp.lt.s32.totalorder %s402, 3
        %s404 = scalar_select %p403, %s402, 3
        %s405 = smul.addr %s404, 4
        %s406 = scalar_lea.vmem %s2, %s405
        %p407 = scmp.lt.s32.totalorder %s20, 1
        %s408 = scalar_select %p407, %s20, 1
        %s409 = smul.addr %s408, 8
        %s410 = scalar_lea.vmem %s3, %s409
        %p411 = scmp.lt.s32.totalorder %s20, 1
        %s412 = scalar_select %p411, %s20, 1
        %s413 = smul.addr %s412, 8
        %s414 = scalar_lea.vmem %s4, %s413
        // Predicated region
        $region74: #{custom_cnn_layer.2} parent=64 // pred_check
          %p415 = pneg %p101
        $region75: #{custom_cnn_layer.2} parent=64 // pred_check_branch
          %417 = sbr.rel (%p415) target = $region77
        $region76: #{custom_cnn_layer.2} parent=64 // pred_region
          %s418 = smul.u32 %s20, 2
          %s419 = sadd.s32 %s418, %s21
        $region77: #{custom_cnn_layer.2} parent=64 // pred_fallthru
          _
        // Predicated region
        $region78: #{custom_cnn_layer.2} parent=64 // pred_check
          %p420 = pneg %p127
        $region79: #{custom_cnn_layer.2} parent=64 // pred_check_branch
          %422 = sbr.rel (%p420) target = $region81
        $region80: #{custom_cnn_layer.2} parent=64 // pred_region
          _
        $region81: #{custom_cnn_layer.2} parent=64 // pred_fallthru
          _
        // Predicated region
        $region82: #{custom_cnn_layer.2} parent=64 // pred_check
          %p423 = pneg %p153
        $region83: #{custom_cnn_layer.2} parent=64 // pred_check_branch
          %425 = sbr.rel (%p423) target = $region85
        $region84: #{custom_cnn_layer.2} parent=64 // pred_region
          _
        $region85: #{custom_cnn_layer.2} parent=64 // pred_fallthru
          _
      $region65: #{custom_cnn_layer.2} parent=5 // pred_fallthru
        _
      %p426 = scmp.le.s32.totalorder 2, %s11
      // Predicated region
      $region86: #{custom_cnn_layer.2} parent=5 // pred_check
        %p427 = pneg %p426
      $region87: #{custom_cnn_layer.2} parent=5 // pred_check_branch
        %429 = sbr.rel (%p427) target = $region89
      $region88: #{custom_cnn_layer.2} parent=5 // pred_region
        %s430 = ssub.s32 %s11, 2
        // Predicated region
        $region90: #{custom_cnn_layer.2} parent=88 // pred_check
          %p431 = pneg %p107
        $region91: #{custom_cnn_layer.2} parent=88 // pred_check_branch
          %433 = sbr.rel (%p431) target = $region93
        $region92: #{custom_cnn_layer.2} parent=88 // pred_region
          %s434 = smul.u32 %s22, 2
          %s435 = sadd.s32 %s434, %s23
          %p436 = scmp.lt.s32.totalorder %s435, 3
          %s437 = scalar_select %p436, %s435, 3
          %s438 = smul.addr %s437, 4
          %s439 = scalar_lea.vmem %s2, %s438
        $region93: #{custom_cnn_layer.2} parent=88 // pred_fallthru
          _
        // Predicated region
        $region94: #{custom_cnn_layer.2} parent=88 // pred_check
          %p440 = pneg %p133
        $region95: #{custom_cnn_layer.2} parent=88 // pred_check_branch
          %442 = sbr.rel (%p440) target = $region97
        $region96: #{custom_cnn_layer.2} parent=88 // pred_region
          %p443 = scmp.lt.s32.totalorder %s22, 1
          %s444 = scalar_select %p443, %s22, 1
          %s445 = smul.addr %s444, 8
          %s446 = scalar_lea.vmem %s3, %s445
        $region97: #{custom_cnn_layer.2} parent=88 // pred_fallthru
          _
        // Predicated region
        $region98: #{custom_cnn_layer.2} parent=88 // pred_check
          %p447 = pneg %p159
        $region99: #{custom_cnn_layer.2} parent=88 // pred_check_branch
          %449 = sbr.rel (%p447) target = $region101
        $region100: #{custom_cnn_layer.2} parent=88 // pred_region
          %p450 = scmp.lt.s32.totalorder %s22, 1
          %s451 = scalar_select %p450, %s22, 1
          %s452 = smul.addr %s451, 8
          %s453 = scalar_lea.vmem %s4, %s452
        $region101: #{custom_cnn_layer.2} parent=88 // pred_fallthru
          _
      $region89: #{custom_cnn_layer.2} parent=5 // pred_fallthru
        _
    $region6: #{custom_cnn_layer.2} parent=1 // loop_footer
      %s15 = sadd.s32 1, %s11
    $region7: #{custom_cnn_layer.2} parent=1 // loop_footer_branch
      %10 = sbr.rel target = $region3
    $region8: #{custom_cnn_layer.2} parent=1 // loop_exit
      _

</llo_original>
